<compile_context>
chip_gen: v7x
topology: tpu7x:2x2x1
jax: 0.10.0
libtpu: 0.0.40
codegen_flags: <defaults>
</compile_context>

<pallas_src>
import functools

import jax
import jax.numpy as jnp
from jax.experimental import pallas as pl
from jax.experimental.pallas import tpu as pltpu


def _round_up(x, m):
    return (x + m - 1) // m * m


# ---------------------------------------------------------------------------
# Pallas kernel: in-VMEM im2col + single fused-K conv matmul + InstanceNorm + LeakyReLU
# ---------------------------------------------------------------------------
def disc_block_kernel(x_ref, w_ref, b_ref, g_ref, be_ref, m_ref, o_ref,
                      col_ref, y_ref, *,
                      nb_i, nb_j, phase_rows, ws, lout_pad, inv_cnt, eps,
                      neg_slope, instancenorm, activation):
    # x_ref  : (1, s*s*Cin, Lin_pad)   space-to-depth'd, zero-padded input (one image)
    # w_ref  : (Cout, K_tot)           fused-K conv weights, K_tot = nb_i*nb_j*s*s*Cin
    # b/g/be : (Cout, 1)               f32 bias / gamma / beta columns
    # m_ref  : (1, Lout_pad)           f32 validity mask over padded flattened output cols
    # o_ref  : (1, Cout, Lout_pad)     lane-dense output block
    # col_ref: VMEM (K_tot, Lout_pad)  in-VMEM im2col scratch
    # y_ref  : VMEM (Cout, Lout_pad)   f32 conv-output scratch

    # Build the in-VMEM im2col: ONE lane-shifted slab copy per (oi, oj) tap-block
    # (nb_i*nb_j copies instead of kh*kw per-tap slices).  Each slab keeps all s*s
    # stride phases contiguous, so the destination slice is phase_rows (=s*s*Cin)
    # sublanes -- aligned for f32 and bf16 packing.
    for oi in range(nb_i):
        for oj in range(nb_j):
            start = oi * ws + oj
            blk = oi * nb_j + oj
            col_ref[blk * phase_rows:(blk + 1) * phase_rows, :] = (
                x_ref[0, :, start:start + lout_pad])

    # Single fused-K MXU matmul (f32 accumulation); conv bias folded in.
    y_ref[...] = (jnp.dot(w_ref[...], col_ref[...],
                          preferred_element_type=jnp.float32)
                  + b_ref[...])
    y = y_ref[...]

    if instancenorm:
        # InstanceNorm2d statistics over valid spatial positions (biased variance),
        # single fused pass via sum / sum-of-squares.
        msk = m_ref[...]                                   # (1, Lout_pad)
        am = y * msk
        s1 = jnp.sum(am, axis=1, keepdims=True)            # (Cout, 1)
        s2 = jnp.sum(y * am, axis=1, keepdims=True)        # (Cout, 1)
        mean = s1 * inv_cnt
        var = jnp.maximum(s2 * inv_cnt - mean * mean, 0.0)
        inv_std = jax.lax.rsqrt(var + eps)
        z = (y - mean) * (inv_std * g_ref[...]) + be_ref[...]
    else:
        z = y

    if activation:
        z = jnp.maximum(z, neg_slope * z)                  # LeakyReLU(0.2)

    o_ref[0] = z.astype(o_ref.dtype)


# ---------------------------------------------------------------------------
# Wrapper: pad + stride space-to-depth (layout only), fused-K weight reorder
# ---------------------------------------------------------------------------
def discriminator_block(x, weight, bias, gamma, beta, *, stride, padding,
                        compute_dtype=jnp.float32, out_dtype=jnp.float32,
                        eps=1e-5, negative_slope=0.2,
                        instancenorm=True, activation=True):
    """x: (N, Cin, H, W) NCHW. weight: (Cout, Cin, kh, kw). Returns (N, Cout, Ho, Wo)."""
    N, Cin, H, W = x.shape
    Cout, _, kh, kw = weight.shape
    s, p = stride, padding

    Ho = (H + 2 * p - kh) // s + 1
    Wo = (W + 2 * p - kw) // s + 1
    oi_max, oj_max = (kh - 1) // s, (kw - 1) // s
    nb_i, nb_j = oi_max + 1, oj_max + 1
    Ws = max(Wo + oj_max, -(-(W + 2 * p) // s))            # s2d width  (>= Wo)
    Hs = max(Ho + oi_max, -(-(H + 2 * p) // s))            # s2d height (>= Ho)
    Hp, Wp = s * Hs, s * Ws
    assert Hp >= H + 2 * p and Wp >= W + 2 * p             # all tap reads in-bounds

    # Zero-pad (top/left by `padding`, bottom/right to the s2d extent).
    xp = jnp.pad(x, ((0, 0), (0, 0),
                     (p, Hp - H - p),
                     (p, Wp - W - p)))

    # Space-to-depth by stride, phase-major channels: channel = (pi*s + pj)*Cin + c.
    xs = (xp.reshape(N, Cin, Hs, s, Ws, s)
            .transpose(0, 3, 5, 1, 2, 4)
            .reshape(N, s * s * Cin, Hs * Ws))

    # Lane padding of the flattened spatial axes to multiples of 128.
    Lout = Ho * Ws
    Lout_pad = _round_up(max(Lout, 1), 128)
    max_start = oi_max * Ws + oj_max
    Lin = Hs * Ws
    Lin_pad = _round_up(max(Lin, max_start + Lout_pad), 128)
    xs = jnp.pad(xs, ((0, 0), (0, 0), (0, Lin_pad - Lin))).astype(compute_dtype)

    # Fused-K weight: (Cout, K_tot) with row = (oi*nb_j+oj)*s*s*Cin + (pi*s+pj)*Cin + c.
    kh_pad, kw_pad = nb_i * s, nb_j * s
    wz = jnp.pad(weight, ((0, 0), (0, 0), (0, kh_pad - kh), (0, kw_pad - kw)))
    K_tot = nb_i * nb_j * s * s * Cin
    w_full = (wz.reshape(Cout, Cin, nb_i, s, nb_j, s)
                .transpose(0, 2, 4, 3, 5, 1)
                .reshape(Cout, K_tot)
                .astype(compute_dtype))

    b_col = bias.reshape(Cout, 1).astype(jnp.float32)
    g_col = gamma.reshape(Cout, 1).astype(jnp.float32)
    be_col = beta.reshape(Cout, 1).astype(jnp.float32)

    # Validity mask over padded flattened output columns.
    lane = jnp.arange(Lout_pad)
    mask = ((lane < Lout) & ((lane % Ws) < Wo)).astype(jnp.float32).reshape(1, Lout_pad)

    # Generation-aware VMEM budget (~3/4 of physical, capped near 100 MiB).
    try:
        cap = pltpu.get_tpu_info().vmem_capacity_bytes
        vmem_limit = int(min(cap * 3 // 4, 100 * 1024 * 1024))
    except Exception:
        vmem_limit = 64 * 1024 * 1024

    in_item = jnp.dtype(compute_dtype).itemsize
    out_item = jnp.dtype(out_dtype).itemsize
    cost = pl.CostEstimate(
        flops=int(2 * N * Ho * Wo * Cin * kh * kw * Cout),
        transcendentals=int(N * Cout),
        bytes_accessed=int(N * s * s * Cin * Lin_pad * in_item
                           + Cout * K_tot * in_item
                           + N * Cout * Lout_pad * out_item))

    kern = functools.partial(
        disc_block_kernel,
        nb_i=nb_i, nb_j=nb_j, phase_rows=s * s * Cin, ws=Ws, lout_pad=Lout_pad,
        inv_cnt=1.0 / float(Ho * Wo), eps=eps, neg_slope=negative_slope,
        instancenorm=instancenorm, activation=activation)

    out = pl.pallas_call(
        kern,
        out_shape=jax.ShapeDtypeStruct((N, Cout, Lout_pad), out_dtype),
        grid_spec=pltpu.PrefetchScalarGridSpec(
            num_scalar_prefetch=0,
            grid=(N,),
            in_specs=[
                pl.BlockSpec((1, s * s * Cin, Lin_pad), lambda n: (n, 0, 0)),
                pl.BlockSpec((Cout, K_tot), lambda n: (0, 0)),
                pl.BlockSpec((Cout, 1), lambda n: (0, 0)),
                pl.BlockSpec((Cout, 1), lambda n: (0, 0)),
                pl.BlockSpec((Cout, 1), lambda n: (0, 0)),
                pl.BlockSpec((1, Lout_pad), lambda n: (0, 0)),
            ],
            out_specs=pl.BlockSpec((1, Cout, Lout_pad), lambda n: (n, 0, 0)),
            scratch_shapes=[
                pltpu.VMEM((K_tot, Lout_pad), compute_dtype),   # im2col scratch
                pltpu.VMEM((Cout, Lout_pad), jnp.float32),      # conv output scratch
            ]),
        compiler_params=pltpu.CompilerParams(
            dimension_semantics=("parallel",),
            vmem_limit_bytes=vmem_limit),
        cost_estimate=cost,
    )(xs, w_full, b_col, g_col, be_col, mask)

    # (N, Cout, Lout_pad) -> crop pad -> (N, Cout, Ho, Ws) -> crop to Wo. No transpose.
    return out[:, :, :Lout].reshape(N, Cout, Ho, Ws)[:, :, :, :Wo]


# ---------------------------------------------------------------------------
# Pure-JAX reference for correctness checks
# ---------------------------------------------------------------------------
def reference(x, weight, bias, gamma, beta, *, stride, padding):
    y = jax.lax.conv_general_dilated(
        x, weight, window_strides=(stride, stride),
        padding=[(padding, padding), (padding, padding)],
        dimension_numbers=("NCHW", "OIHW", "NCHW"))
    y = y + bias.reshape(1, -1, 1, 1)
    mean = jnp.mean(y, axis=(2, 3), keepdims=True)
    var = jnp.mean((y - mean) ** 2, axis=(2, 3), keepdims=True)
    y = (y - mean) / jnp.sqrt(var + 1e-5)
    y = y * gamma.reshape(1, -1, 1, 1) + beta.reshape(1, -1, 1, 1)
    return jnp.where(y >= 0, y, 0.2 * y)


if __name__ == "__main__":
    # Small shapes consistent with a WGAN discriminator block:
    # in_channels=4, out_channels=8, kernel_size=4, stride=2, padding=1
    N, Cin, H, W = 2, 4, 16, 16
    Cout, ksize, stride, padding = 8, 4, 2, 1

    key = jax.random.PRNGKey(0)
    kx, kw_, kb, kg, kbe = jax.random.split(key, 5)
    x = jax.random.normal(kx, (N, Cin, H, W), dtype=jnp.float32)
    weight = jax.random.normal(kw_, (Cout, Cin, ksize, ksize), dtype=jnp.float32) * 0.1
    bias = jax.random.normal(kb, (Cout,), dtype=jnp.float32) * 0.1
    gamma = 1.0 + 0.1 * jax.random.normal(kg, (Cout,), dtype=jnp.float32)
    beta = 0.1 * jax.random.normal(kbe, (Cout,), dtype=jnp.float32)

    ref = reference(x, weight, bias, gamma, beta, stride=stride, padding=padding)

    # f32 path: strict correctness check.
    out_f32 = discriminator_block(x, weight, bias, gamma, beta,
                                  stride=stride, padding=padding,
                                  compute_dtype=jnp.float32)
    out_f32 = jax.block_until_ready(out_f32)
    assert out_f32.shape == (N, Cout, H // 2, W // 2), out_f32.shape
    assert jnp.allclose(out_f32, ref, atol=1e-3, rtol=1e-3), \
        float(jnp.max(jnp.abs(out_f32 - ref)))

    # bf16 matmul-operand path (v6e/v7x MXU rate, halved input DMA): looser tolerance.
    out_bf16 = discriminator_block(x, weight, bias, gamma, beta,
                                   stride=stride, padding=padding,
                                   compute_dtype=jnp.bfloat16)
    out_bf16 = jax.block_until_ready(out_bf16)
    assert out_bf16.shape == (N, Cout, H // 2, W // 2), out_bf16.shape
    assert jnp.allclose(out_bf16, ref, atol=1.5e-1, rtol=1e-1), \
        float(jnp.max(jnp.abs(out_bf16 - ref)))

    print("KERNEL_OK")
</pallas_src>

<mosaic_0001>
module attributes {stable_mosaic.version = 11 : i64} {
  func.func @disc_block_kernel(%arg0: i32, %arg1: memref<1x16x256xf32, #tpu.memory_space<vmem>>, %arg2: memref<8x64xf32, #tpu.memory_space<vmem>>, %arg3: memref<8x1xf32, #tpu.memory_space<vmem>>, %arg4: memref<8x1xf32, #tpu.memory_space<vmem>>, %arg5: memref<8x1xf32, #tpu.memory_space<vmem>>, %arg6: memref<1x128xf32, #tpu.memory_space<vmem>>, %arg7: memref<1x8x128xf32, #tpu.memory_space<vmem>>, %arg8: memref<64x128xf32, #tpu.memory_space<vmem>>, %arg9: memref<8x128xf32, #tpu.memory_space<vmem>>) attributes {dimension_semantics = [#tpu.dimension_semantics<parallel>], iteration_bounds = array<i64: 2>, scalar_prefetch = 0 : i64, scratch_operands = 2 : i64, tpu.core_type = #tpu.core_type<tc>, window_params = [{transform_indices = @transform_0, window_bounds = array<i64: 1, 16, 256>}, {pipeline_mode = #tpu.pipeline_mode<synchronous>, transform_indices = @transform_1, window_bounds = array<i64: 8, 64>}, {pipeline_mode = #tpu.pipeline_mode<synchronous>, transform_indices = @transform_2, window_bounds = array<i64: 8, 1>}, {pipeline_mode = #tpu.pipeline_mode<synchronous>, transform_indices = @transform_3, window_bounds = array<i64: 8, 1>}, {pipeline_mode = #tpu.pipeline_mode<synchronous>, transform_indices = @transform_4, window_bounds = array<i64: 8, 1>}, {pipeline_mode = #tpu.pipeline_mode<synchronous>, transform_indices = @transform_5, window_bounds = array<i64: 1, 128>}, {transform_indices = @transform_6, window_bounds = array<i64: 1, 8, 128>}]} {
    %c0 = arith.constant 0 : index
    %c0_0 = arith.constant 0 : index
    %c0_1 = arith.constant 0 : index
    %0 = vector.load %arg1[%c0, %c0_0, %c0_1] : memref<1x16x256xf32, #tpu.memory_space<vmem>>, vector<1x16x128xf32>
    %1 = vector.shape_cast %0 : vector<1x16x128xf32> to vector<16x128xf32>
    %c0_2 = arith.constant 0 : index
    %c0_3 = arith.constant 0 : index
    %2 = vector.load %arg8[%c0_2, %c0_3] : memref<64x128xf32, #tpu.memory_space<vmem>>, vector<16x128xf32>
    tpu.vector_store %arg8[%c0_2, %c0_3], %1 {strides = array<i32>} : memref<64x128xf32, #tpu.memory_space<vmem>>, vector<16x128xf32>,
    %c0_4 = arith.constant 0 : index
    %c0_5 = arith.constant 0 : index
    %c1 = arith.constant 1 : index
    %3 = vector.load %arg1[%c0_4, %c0_5, %c1] : memref<1x16x256xf32, #tpu.memory_space<vmem>>, vector<1x16x128xf32>
    %4 = vector.shape_cast %3 : vector<1x16x128xf32> to vector<16x128xf32>
    %c16 = arith.constant 16 : index
    %c0_6 = arith.constant 0 : index
    %5 = vector.load %arg8[%c16, %c0_6] : memref<64x128xf32, #tpu.memory_space<vmem>>, vector<16x128xf32>
    tpu.vector_store %arg8[%c16, %c0_6], %4 {strides = array<i32>} : memref<64x128xf32, #tpu.memory_space<vmem>>, vector<16x128xf32>,
    %c0_7 = arith.constant 0 : index
    %c0_8 = arith.constant 0 : index
    %c9 = arith.constant 9 : index
    %6 = vector.load %arg1[%c0_7, %c0_8, %c9] : memref<1x16x256xf32, #tpu.memory_space<vmem>>, vector<1x16x128xf32>
    %7 = vector.shape_cast %6 : vector<1x16x128xf32> to vector<16x128xf32>
    %c32 = arith.constant 32 : index
    %c0_9 = arith.constant 0 : index
    %8 = vector.load %arg8[%c32, %c0_9] : memref<64x128xf32, #tpu.memory_space<vmem>>, vector<16x128xf32>
    tpu.vector_store %arg8[%c32, %c0_9], %7 {strides = array<i32>} : memref<64x128xf32, #tpu.memory_space<vmem>>, vector<16x128xf32>,
    %c0_10 = arith.constant 0 : index
    %c0_11 = arith.constant 0 : index
    %c10 = arith.constant 10 : index
    %9 = vector.load %arg1[%c0_10, %c0_11, %c10] : memref<1x16x256xf32, #tpu.memory_space<vmem>>, vector<1x16x128xf32>
    %10 = vector.shape_cast %9 : vector<1x16x128xf32> to vector<16x128xf32>
    %c48 = arith.constant 48 : index
    %c0_12 = arith.constant 0 : index
    %11 = vector.load %arg8[%c48, %c0_12] : memref<64x128xf32, #tpu.memory_space<vmem>>, vector<16x128xf32>
    tpu.vector_store %arg8[%c48, %c0_12], %10 {strides = array<i32>} : memref<64x128xf32, #tpu.memory_space<vmem>>, vector<16x128xf32>,
    %c0_13 = arith.constant 0 : index
    %c0_14 = arith.constant 0 : index
    %12 = vector.load %arg2[%c0_13, %c0_14] : memref<8x64xf32, #tpu.memory_space<vmem>>, vector<8x64xf32>
    %c0_15 = arith.constant 0 : index
    %c0_16 = arith.constant 0 : index
    %13 = vector.load %arg8[%c0_15, %c0_16] : memref<64x128xf32, #tpu.memory_space<vmem>>, vector<64x128xf32>
    %cst = arith.constant dense<0.000000e+00> : vector<8x128xf32>
    %14 = tpu.matmul %12, %13, %cst {dimension_numbers = #tpu.dot_dimension_numbers<[1], [0], [0], [1], [0, 0, 1, 1], [], []>} : vector<8x64xf32>, vector<64x128xf32>, vector<8x128xf32> -> vector<8x128xf32>
    %c0_17 = arith.constant 0 : index
    %c0_18 = arith.constant 0 : index
    %15 = vector.load %arg3[%c0_17, %c0_18] : memref<8x1xf32, #tpu.memory_space<vmem>>, vector<8x1xf32>
    %16 = vector.broadcast %15 : vector<8x1xf32> to vector<8x128xf32>
    %17 = arith.addf %14, %16 : vector<8x128xf32>
    %c0_19 = arith.constant 0 : index
    %c0_20 = arith.constant 0 : index
    %18 = vector.load %arg9[%c0_19, %c0_20] : memref<8x128xf32, #tpu.memory_space<vmem>>, vector<8x128xf32>
    tpu.vector_store %arg9[%c0_19, %c0_20], %17 {strides = array<i32>} : memref<8x128xf32, #tpu.memory_space<vmem>>, vector<8x128xf32>,
    %c0_21 = arith.constant 0 : index
    %c0_22 = arith.constant 0 : index
    %19 = vector.load %arg9[%c0_21, %c0_22] : memref<8x128xf32, #tpu.memory_space<vmem>>, vector<8x128xf32>
    %c0_23 = arith.constant 0 : index
    %c0_24 = arith.constant 0 : index
    %20 = vector.load %arg6[%c0_23, %c0_24] : memref<1x128xf32, #tpu.memory_space<vmem>>, vector<1x128xf32>
    %21 = vector.broadcast %20 : vector<1x128xf32> to vector<8x128xf32>
    %22 = arith.mulf %19, %21 : vector<8x128xf32>
    %cst_25 = arith.constant dense<0.000000e+00> : vector<8xf32>
    %23 = vector.multi_reduction <add>, %22, %cst_25 [1] : vector<8x128xf32> to vector<8xf32>
    %24 = vector.shape_cast %23 : vector<8xf32> to vector<8x1xf32>
    %25 = arith.mulf %19, %22 : vector<8x128xf32>
    %cst_26 = arith.constant dense<0.000000e+00> : vector<8xf32>
    %26 = vector.multi_reduction <add>, %25, %cst_26 [1] : vector<8x128xf32> to vector<8xf32>
    %27 = vector.shape_cast %26 : vector<8xf32> to vector<8x1xf32>
    %cst_27 = arith.constant 1.562500e-02 : f32
    %28 = vector.broadcast %cst_27 : f32 to vector<8x1xf32>
    %29 = arith.mulf %24, %28 : vector<8x1xf32>
    %cst_28 = arith.constant 1.562500e-02 : f32
    %30 = vector.broadcast %cst_28 : f32 to vector<8x1xf32>
    %31 = arith.mulf %27, %30 : vector<8x1xf32>
    %32 = arith.mulf %29, %29 : vector<8x1xf32>
    %33 = arith.subf %31, %32 : vector<8x1xf32>
    %cst_29 = arith.constant 0.000000e+00 : f32
    %34 = vector.broadcast %cst_29 : f32 to vector<8x1xf32>
    %35 = arith.maximumf %33, %34 : vector<8x1xf32>
    %cst_30 = arith.constant 9.99999974E-6 : f32
    %36 = vector.broadcast %cst_30 : f32 to vector<8x1xf32>
    %37 = arith.addf %35, %36 : vector<8x1xf32>
    %38 = math.rsqrt %37 : vector<8x1xf32>
    %39 = vector.broadcast %29 : vector<8x1xf32> to vector<8x128xf32>
    %40 = arith.subf %19, %39 : vector<8x128xf32>
    %c0_31 = arith.constant 0 : index
    %c0_32 = arith.constant 0 : index
    %41 = vector.load %arg4[%c0_31, %c0_32] : memref<8x1xf32, #tpu.memory_space<vmem>>, vector<8x1xf32>
    %42 = arith.mulf %38, %41 : vector<8x1xf32>
    %43 = vector.broadcast %42 : vector<8x1xf32> to vector<8x128xf32>
    %44 = arith.mulf %40, %43 : vector<8x128xf32>
    %c0_33 = arith.constant 0 : index
    %c0_34 = arith.constant 0 : index
    %45 = vector.load %arg5[%c0_33, %c0_34] : memref<8x1xf32, #tpu.memory_space<vmem>>, vector<8x1xf32>
    %46 = vector.broadcast %45 : vector<8x1xf32> to vector<8x128xf32>
    %47 = arith.addf %44, %46 : vector<8x128xf32>
    %cst_35 = arith.constant 2.000000e-01 : f32
    %48 = vector.broadcast %cst_35 : f32 to vector<8x128xf32>
    %49 = arith.mulf %48, %47 : vector<8x128xf32>
    %50 = arith.maximumf %47, %49 : vector<8x128xf32>
    %c0_36 = arith.constant 0 : index
    %c0_37 = arith.constant 0 : index
    %c0_38 = arith.constant 0 : index
    %51 = vector.load %arg7[%c0_36, %c0_37, %c0_38] : memref<1x8x128xf32, #tpu.memory_space<vmem>>, vector<1x8x128xf32>
    %52 = vector.shape_cast %51 : vector<1x8x128xf32> to vector<8x128xf32>
    %53 = vector.shape_cast %50 : vector<8x128xf32> to vector<1x8x128xf32>
    tpu.vector_store %arg7[%c0_36, %c0_37, %c0_38], %53 {strides = array<i32>} : memref<1x8x128xf32, #tpu.memory_space<vmem>>, vector<1x8x128xf32>,
    return
  }
  func.func @transform_0(%arg0: i32) -> (i32, i32, i32) {
    %c0_i32 = arith.constant 0 : i32
    %c0_i32_0 = arith.constant 0 : i32
    %c0_i32_1 = arith.constant 0 : i32
    return %arg0, %c0_i32, %c0_i32_0 : i32, i32, i32
  }
  func.func @transform_1(%arg0: i32) -> (i32, i32) {
    %c0_i32 = arith.constant 0 : i32
    %c0_i32_0 = arith.constant 0 : i32
    %c0_i32_1 = arith.constant 0 : i32
    return %c0_i32, %c0_i32_0 : i32, i32
  }
  func.func @transform_2(%arg0: i32) -> (i32, i32) {
    %c0_i32 = arith.constant 0 : i32
    %c0_i32_0 = arith.constant 0 : i32
    %c0_i32_1 = arith.constant 0 : i32
    return %c0_i32, %c0_i32_0 : i32, i32
  }
  func.func @transform_3(%arg0: i32) -> (i32, i32) {
    %c0_i32 = arith.constant 0 : i32
    %c0_i32_0 = arith.constant 0 : i32
    %c0_i32_1 = arith.constant 0 : i32
    return %c0_i32, %c0_i32_0 : i32, i32
  }
  func.func @transform_4(%arg0: i32) -> (i32, i32) {
    %c0_i32 = arith.constant 0 : i32
    %c0_i32_0 = arith.constant 0 : i32
    %c0_i32_1 = arith.constant 0 : i32
    return %c0_i32, %c0_i32_0 : i32, i32
  }
  func.func @transform_5(%arg0: i32) -> (i32, i32) {
    %c0_i32 = arith.constant 0 : i32
    %c0_i32_0 = arith.constant 0 : i32
    %c0_i32_1 = arith.constant 0 : i32
    return %c0_i32, %c0_i32_0 : i32, i32
  }
  func.func @transform_6(%arg0: i32) -> (i32, i32, i32) {
    %c0_i32 = arith.constant 0 : i32
    %c0_i32_0 = arith.constant 0 : i32
    %c0_i32_1 = arith.constant 0 : i32
    return %arg0, %c0_i32, %c0_i32_0 : i32, i32, i32
  }
}

</mosaic_0001>

<llo_original>
// kernel: tpu_custom_call.1
$region0: #{tpu_custom_call.1}
  #allocation0 [shape = 'u32[]', space=smem, size = 0x4, offset = 0x4, fixed_abs, tag = 'smem constant byte address 0x4 - core index']
  #allocation1 [shape = 'u32[144,128]{1,0:T(1,128)}', space=vmem, size = 0x12000, scoped, tag = 'internal scratch']
  #allocation2 [shape = 'f32[64,128]{1,0:T(8,128)}', space=vmem, size = 0x8000, scoped, tag = 'scratch operand']
  #allocation3 [shape = 'f32[8,128]{1,0:T(8,128)}', space=vmem, size = 0x1000, scoped, tag = 'scratch operand']
  %s0 = inlined_call_operand.hbm [shape: f32[2,16,256], index: 0, kind: input, shape index: {}]
  %s1 = inlined_call_operand.hbm [shape: f32[8,64], index: 1, kind: input, shape index: {}]
  %s2 = inlined_call_operand.hbm [shape: f32[8,1], index: 2, kind: input, shape index: {}]
  %s3 = inlined_call_operand.hbm [shape: f32[8,1], index: 3, kind: input, shape index: {}]
  %s4 = inlined_call_operand.hbm [shape: f32[8,1], index: 4, kind: input, shape index: {}]
  %s5 = inlined_call_operand.hbm [shape: f32[1,128], index: 5, kind: input, shape index: {}]
  %s6 = inlined_call_operand.hbm [shape: f32[2,8,128], index: 6, kind: output, shape index: {}]
  %s7 = sld [smem:[#allocation0]]
  $region81: #{tpu_custom_call.1} parent=0
    _
  %s9 = ssub.s32 1, %s7
  %s10 = scalar_select 0, %s9, %s7
  $region1: #{tpu_custom_call.1} parent=0
    #allocation4 [shape = 'u8[32768]{0}', space=vmem, size = 0x8000, scoped, tag = 'input window, operand 0']
    #allocation5 [shape = 's32[2]{0}', space=sflag, size = 0x8, scoped, tag = 'scoped memory for tpu_custom_call.1']
    #allocation6 [shape = 's32[2]{0}', space=sflag, size = 0x8, scoped, tag = 'scoped memory for tpu_custom_call.1']
    #allocation7 [shape = 'u8[4096]{0}', space=vmem, size = 0x1000, scoped, tag = 'input window, operand 1, single buffered']
    #allocation8 [shape = 's32[1]{0}', space=sflag, size = 0x4, scoped, tag = 'scoped memory for tpu_custom_call.1']
    #allocation9 [shape = 'u8[4096]{0}', space=vmem, size = 0x1000, scoped, tag = 'input window, operand 2, single buffered']
    #allocation10 [shape = 'u8[4096]{0}', space=vmem, size = 0x1000, scoped, tag = 'input window, operand 3, single buffered']
    #allocation11 [shape = 's32[1]{0}', space=sflag, size = 0x4, scoped, tag = 'scoped memory for tpu_custom_call.1']
    #allocation12 [shape = 'u8[4096]{0}', space=vmem, size = 0x1000, scoped, tag = 'input window, operand 4, single buffered']
    #allocation13 [shape = 'u8[512]{0}', space=vmem, size = 0x400, scoped, tag = 'input window, operand 5, single buffered']
    #allocation14 [shape = 's32[1]{0}', space=sflag, size = 0x4, scoped, tag = 'scoped memory for tpu_custom_call.1']
    #allocation15 [shape = 'u8[8192]{0}', space=vmem, size = 0x2000, scoped, tag = 'output window, operand 0']
    %11 = vsyncpa [#allocation5], 0
    %s12 = scalar_lea.sflag [#allocation5], 1
    %13 = vsyncpa %s12, 0
    %14 = vsyncpa [#allocation8], 0
    %15 = vsyncpa [#allocation11], 0
    %16 = vsyncpa [#allocation14], 0
    %17 = vsyncpa [#allocation6], 0
    %s18 = scalar_lea.sflag [#allocation6], 1
    %19 = vsyncpa %s18, 0
    loop: start=0, step=1, limit=4
    $region2: #{tpu_custom_call.1} parent=1 // loop_pre_header
      _
    $region3: #{tpu_custom_call.1} parent=1 // loop_header
      %s21 = sphi 0, %s25
      %p22 = scmp.ge.s32.totalorder %s21, 4
      %s31 = sphi 0, %s33
      %s34 = sphi 0, %s31
      %s35 = sphi 0, %s34
      %s51 = sphi 0, %s35
      %s55 = sphi 0, %s55
      %s57 = sphi 0, %s55
      %s58 = sphi 0, %s57
      %s72 = sphi 0, %s58
      %s76 = sphi 0, %s76
      %s78 = sphi 0, %s76
      %s79 = sphi 0, %s78
      %s93 = sphi 0, %s79
      %s97 = sphi 0, %s97
      %s99 = sphi 0, %s97
      %s100 = sphi 0, %s99
      %s114 = sphi 0, %s100
      %s118 = sphi 0, %s118
      %s120 = sphi 0, %s118
      %s121 = sphi 0, %s120
      %s135 = sphi 0, %s121
      %s139 = sphi 0, %s139
      %s141 = sphi 0, %s139
      %s142 = sphi 0, %s141
      %s156 = sphi 0, %s142
      %s162 = sphi 0, %s164
      %s165 = sphi 0, %s162
      %s166 = sphi 0, %s165
      %s182 = sphi 0, %s166
    $region4: #{tpu_custom_call.1} parent=1 // loop_header_branch
      %24 = sbr.rel (%p22) target = $region8
    $region5: #{tpu_custom_call.1} parent=1 // loop_body
      %s26 = ssub.s32 %s21, 1
      %s27 = ssub.s32 %s21, 2
      %s28 = sadd.s32 %s21, 1
      %s29 = ssub.s32 %s21, %s28
      %p30 = scmp.eq.s32.totalorder %s29, 0
      %s32 = sadd.s32 %s31, 1
      %s33 = scalar_select %p30, %s31, %s32
      %p36 = pneg %p30
      %p37 = scmp.eq.s32.totalorder %s21, 1
      %p38 = por %p36, %p37
      %p39 = scmp.ne.s32.totalorder %s31, %s34
      %p40 = scmp.eq.s32.totalorder %s21, 0
      %p41 = por %p39, %p40
      %p42 = scmp.ne.s32.totalorder %s31, %s34
      %p43 = scmp.eq.s32.totalorder %s26, 1
      %p44 = por %p42, %p43
      %p45 = scmp.ne.s32.totalorder %s34, %s35
      %p46 = scmp.eq.s32.totalorder %s26, 0
      %p47 = por %p45, %p46
      %p48 = scmp.ne.s32.totalorder %s34, %s35
      %p49 = scmp.eq.s32.totalorder %s27, 1
      %p50 = por %p48, %p49
      %p52 = scmp.ne.s32.totalorder %s35, %s51
      %p53 = scmp.eq.s32.totalorder %s27, 0
      %p54 = por %p52, %p53
      %s56 = sadd.s32 %s55, 1
      %p59 = scmp.eq.s32.totalorder %s21, 1
      %p60 = scmp.ne.s32.totalorder %s55, %s57
      %p61 = scmp.eq.s32.totalorder %s21, 0
      %p62 = por %p60, %p61
      %p63 = scmp.ne.s32.totalorder %s55, %s57
      %p64 = scmp.eq.s32.totalorder %s26, 1
      %p65 = por %p63, %p64
      %p66 = scmp.ne.s32.totalorder %s57, %s58
      %p67 = scmp.eq.s32.totalorder %s26, 0
      %p68 = por %p66, %p67
      %p69 = scmp.ne.s32.totalorder %s57, %s58
      %p70 = scmp.eq.s32.totalorder %s27, 1
      %p71 = por %p69, %p70
      %p73 = scmp.ne.s32.totalorder %s58, %s72
      %p74 = scmp.eq.s32.totalorder %s27, 0
      %p75 = por %p73, %p74
      %s77 = sadd.s32 %s76, 1
      %p80 = scmp.eq.s32.totalorder %s21, 1
      %p81 = scmp.ne.s32.totalorder %s76, %s78
      %p82 = scmp.eq.s32.totalorder %s21, 0
      %p83 = por %p81, %p82
      %p84 = scmp.ne.s32.totalorder %s76, %s78
      %p85 = scmp.eq.s32.totalorder %s26, 1
      %p86 = por %p84, %p85
      %p87 = scmp.ne.s32.totalorder %s78, %s79
      %p88 = scmp.eq.s32.totalorder %s26, 0
      %p89 = por %p87, %p88
      %p90 = scmp.ne.s32.totalorder %s78, %s79
      %p91 = scmp.eq.s32.totalorder %s27, 1
      %p92 = por %p90, %p91
      %p94 = scmp.ne.s32.totalorder %s79, %s93
      %p95 = scmp.eq.s32.totalorder %s27, 0
      %p96 = por %p94, %p95
      %s98 = sadd.s32 %s97, 1
      %p101 = scmp.eq.s32.totalorder %s21, 1
      %p102 = scmp.ne.s32.totalorder %s97, %s99
      %p103 = scmp.eq.s32.totalorder %s21, 0
      %p104 = por %p102, %p103
      %p105 = scmp.ne.s32.totalorder %s97, %s99
      %p106 = scmp.eq.s32.totalorder %s26, 1
      %p107 = por %p105, %p106
      %p108 = scmp.ne.s32.totalorder %s99, %s100
      %p109 = scmp.eq.s32.totalorder %s26, 0
      %p110 = por %p108, %p109
      %p111 = scmp.ne.s32.totalorder %s99, %s100
      %p112 = scmp.eq.s32.totalorder %s27, 1
      %p113 = por %p111, %p112
      %p115 = scmp.ne.s32.totalorder %s100, %s114
      %p116 = scmp.eq.s32.totalorder %s27, 0
      %p117 = por %p115, %p116
      %s119 = sadd.s32 %s118, 1
      %p122 = scmp.eq.s32.totalorder %s21, 1
      %p123 = scmp.ne.s32.totalorder %s118, %s120
      %p124 = scmp.eq.s32.totalorder %s21, 0
      %p125 = por %p123, %p124
      %p126 = scmp.ne.s32.totalorder %s118, %s120
      %p127 = scmp.eq.s32.totalorder %s26, 1
      %p128 = por %p126, %p127
      %p129 = scmp.ne.s32.totalorder %s120, %s121
      %p130 = scmp.eq.s32.totalorder %s26, 0
      %p131 = por %p129, %p130
      %p132 = scmp.ne.s32.totalorder %s120, %s121
      %p133 = scmp.eq.s32.totalorder %s27, 1
      %p134 = por %p132, %p133
      %p136 = scmp.ne.s32.totalorder %s121, %s135
      %p137 = scmp.eq.s32.totalorder %s27, 0
      %p138 = por %p136, %p137
      %s140 = sadd.s32 %s139, 1
      %p143 = scmp.eq.s32.totalorder %s21, 1
      %p144 = scmp.ne.s32.totalorder %s139, %s141
      %p145 = scmp.eq.s32.totalorder %s21, 0
      %p146 = por %p144, %p145
      %p147 = scmp.ne.s32.totalorder %s139, %s141
      %p148 = scmp.eq.s32.totalorder %s26, 1
      %p149 = por %p147, %p148
      %p150 = scmp.ne.s32.totalorder %s141, %s142
      %p151 = scmp.eq.s32.totalorder %s26, 0
      %p152 = por %p150, %p151
      %p153 = scmp.ne.s32.totalorder %s141, %s142
      %p154 = scmp.eq.s32.totalorder %s27, 1
      %p155 = por %p153, %p154
      %p157 = scmp.ne.s32.totalorder %s142, %s156
      %p158 = scmp.eq.s32.totalorder %s27, 0
      %p159 = por %p157, %p158
      %s160 = ssub.s32 %s21, %s28
      %p161 = scmp.eq.s32.totalorder %s160, 0
      %s163 = sadd.s32 %s162, 1
      %s164 = scalar_select %p161, %s162, %s163
      %p167 = pneg %p161
      %p168 = scmp.eq.s32.totalorder %s21, 1
      %p169 = por %p167, %p168
      %p170 = scmp.ne.s32.totalorder %s162, %s165
      %p171 = scmp.eq.s32.totalorder %s21, 0
      %p172 = por %p170, %p171
      %p173 = scmp.ne.s32.totalorder %s162, %s165
      %p174 = scmp.eq.s32.totalorder %s26, 1
      %p175 = por %p173, %p174
      %p176 = scmp.ne.s32.totalorder %s165, %s166
      %p177 = scmp.eq.s32.totalorder %s26, 0
      %p178 = por %p176, %p177
      %p179 = scmp.ne.s32.totalorder %s165, %s166
      %p180 = scmp.eq.s32.totalorder %s27, 1
      %p181 = por %p179, %p180
      %p183 = scmp.ne.s32.totalorder %s166, %s182
      %p184 = scmp.eq.s32.totalorder %s27, 0
      %p185 = por %p183, %p184
      %p186 = scmp.le.s32.totalorder 1, %s21
      %p187 = scmp.lt.s32.totalorder %s21, 3
      %p188 = pnand %p186, %p187
      %p189 = pneg %p188
      // Predicated region
      $region9: #{tpu_custom_call.1} parent=5 // pred_check
        _
      $region10: #{tpu_custom_call.1} parent=5 // pred_check_branch
        %191 = sbr.rel (%p188) target = $region12
      $region11: #{tpu_custom_call.1} parent=5 // pred_region
        %s192 = ssub.s32 %s21, 1
        // Predicated region
        $region13: #{tpu_custom_call.1} parent=11 // pred_check
          %p193 = pneg %p68
        $region14: #{tpu_custom_call.1} parent=11 // pred_check_branch
          %195 = sbr.rel (%p193) target = $region16
        $region15: #{tpu_custom_call.1} parent=11 // pred_region
          %s197 = ssub.s32 128, 128
          %198 = vsyncadd [#allocation8], %s197
          %s200 = sshll.u32 [#allocation7], 4
          %s201 = int_to_ptr.vmem [resolvable:$true] %s200
          %203 = dma.hbm_to_vmem [thread:$0]  %s1, 128, %s201, [#allocation8]
        $region16: #{tpu_custom_call.1} parent=11 // pred_fallthru
          _
        // Predicated region
        $region17: #{tpu_custom_call.1} parent=11 // pred_check
          %p204 = pneg %p89
        $region18: #{tpu_custom_call.1} parent=11 // pred_check_branch
          %206 = sbr.rel (%p204) target = $region20
        $region19: #{tpu_custom_call.1} parent=11 // pred_region
          %s208 = ssub.s32 128, 128
          %209 = vsyncadd [#allocation8], %s208
          %s211 = sshll.u32 [#allocation9], 4
          %s212 = int_to_ptr.vmem [resolvable:$true] %s211
          %214 = dma.hbm_to_vmem [thread:$0]  %s2, 128, %s212, [#allocation8]
        $region20: #{tpu_custom_call.1} parent=11 // pred_fallthru
          _
        // Predicated region
        $region21: #{tpu_custom_call.1} parent=11 // pred_check
          %p215 = pneg %p110
        $region22: #{tpu_custom_call.1} parent=11 // pred_check_branch
          %217 = sbr.rel (%p215) target = $region24
        $region23: #{tpu_custom_call.1} parent=11 // pred_region
          %s219 = ssub.s32 128, 128
          %220 = vsyncadd [#allocation11], %s219
          %s222 = sshll.u32 [#allocation10], 4
          %s223 = int_to_ptr.vmem [resolvable:$true] %s222
          %225 = dma.hbm_to_vmem [thread:$0]  %s3, 128, %s223, [#allocation11]
        $region24: #{tpu_custom_call.1} parent=11 // pred_fallthru
          _
        // Predicated region
        $region25: #{tpu_custom_call.1} parent=11 // pred_check
          %p226 = pneg %p131
        $region26: #{tpu_custom_call.1} parent=11 // pred_check_branch
          %228 = sbr.rel (%p226) target = $region28
        $region27: #{tpu_custom_call.1} parent=11 // pred_region
          %s230 = ssub.s32 128, 128
          %231 = vsyncadd [#allocation11], %s230
          %s233 = sshll.u32 [#allocation12], 4
          %s234 = int_to_ptr.vmem [resolvable:$true] %s233
          %236 = dma.hbm_to_vmem [thread:$0]  %s4, 128, %s234, [#allocation11]
        $region28: #{tpu_custom_call.1} parent=11 // pred_fallthru
          _
        // Predicated region
        $region29: #{tpu_custom_call.1} parent=11 // pred_check
          %p237 = pneg %p152
        $region30: #{tpu_custom_call.1} parent=11 // pred_check_branch
          %239 = sbr.rel (%p237) target = $region32
        $region31: #{tpu_custom_call.1} parent=11 // pred_region
          %s241 = ssub.s32 16, 16
          %242 = vsyncadd [#allocation14], %s241
          %s244 = sshll.u32 [#allocation13], 4
          %s245 = int_to_ptr.vmem [resolvable:$true] %s244
          %247 = dma.hbm_to_vmem [thread:$0]  %s5, 16, %s245, [#allocation14]
        $region32: #{tpu_custom_call.1} parent=11 // pred_fallthru
          _
      $region12: #{tpu_custom_call.1} parent=5 // pred_fallthru
        _
      %p248 = scmp.lt.s32.totalorder %s21, 2
      // Predicated region
      $region33: #{tpu_custom_call.1} parent=5 // pred_check
        %p249 = pneg %p248
      $region34: #{tpu_custom_call.1} parent=5 // pred_check_branch
        %251 = sbr.rel (%p249) target = $region36
      $region35: #{tpu_custom_call.1} parent=5 // pred_region
        // Predicated region
        $region37: #{tpu_custom_call.1} parent=35 // pred_check
          %p252 = pneg %p41
        $region38: #{tpu_custom_call.1} parent=35 // pred_check_branch
          %254 = sbr.rel (%p252) target = $region40
        $region39: #{tpu_custom_call.1} parent=35 // pred_region
          %s255 = sand.u32 %s31, 1
          %s256 = scalar_lea.sflag [#allocation5], %s255
          %s257 = sand.u32 %s31, 1
          %s258 = smul.addr %s257, 32
          %s259 = scalar_lea.vmem [#allocation4], %s258
          %s261 = ssub.s32 512, 512
          %262 = vsyncadd %s256, %s261
          %s263 = smul.addr %s21, 4
          %s264 = smul.addr %s263, 128
          %s265 = scalar_lea.hbm %s0, %s264
          %s266 = sshll.u32 %s259, 4
          %s267 = int_to_ptr.vmem [resolvable:$true] %s266
          %272 = dma.hbm_to_vmem [thread:$0]  %s265, 512, %s267, %s256, 256, 256, 16
        $region40: #{tpu_custom_call.1} parent=35 // pred_fallthru
          _
      $region36: #{tpu_custom_call.1} parent=5 // pred_fallthru
        _
      %p273 = scmp.le.s32.totalorder 1, %s21
      %p274 = scmp.lt.s32.totalorder %s21, 3
      %p275 = pnand %p273, %p274
      %p276 = pneg %p275
      // Predicated region
      $region41: #{tpu_custom_call.1} parent=5 // pred_check
        _
      $region42: #{tpu_custom_call.1} parent=5 // pred_check_branch
        %278 = sbr.rel (%p275) target = $region44
      $region43: #{tpu_custom_call.1} parent=5 // pred_region
        %s279 = ssub.s32 %s21, 1
        %s280 = sand.u32 %s34, 1
        %s281 = scalar_lea.sflag [#allocation5], %s280
        %s282 = sand.u32 %s34, 1
        %s283 = smul.addr %s282, 32
        %s284 = scalar_lea.vmem [#allocation4], %s283
        // Predicated region
        $region45: #{tpu_custom_call.1} parent=43 // pred_check
          %p285 = pneg %p47
        $region46: #{tpu_custom_call.1} parent=43 // pred_check_branch
          %287 = sbr.rel (%p285) target = $region48
        $region47: #{tpu_custom_call.1} parent=43 // pred_region
          %288 = dma.done %s281, 512
        $region48: #{tpu_custom_call.1} parent=43 // pred_fallthru
          _
        // Predicated region
        $region49: #{tpu_custom_call.1} parent=43 // pred_check
          %p289 = pneg %p68
        $region50: #{tpu_custom_call.1} parent=43 // pred_check_branch
          %291 = sbr.rel (%p289) target = $region52
        $region51: #{tpu_custom_call.1} parent=43 // pred_region
          %292 = dma.done [#allocation8], 128
        $region52: #{tpu_custom_call.1} parent=43 // pred_fallthru
          _
        // Predicated region
        $region53: #{tpu_custom_call.1} parent=43 // pred_check
          %p293 = pneg %p89
        $region54: #{tpu_custom_call.1} parent=43 // pred_check_branch
          %295 = sbr.rel (%p293) target = $region56
        $region55: #{tpu_custom_call.1} parent=43 // pred_region
          %296 = dma.done [#allocation8], 128
        $region56: #{tpu_custom_call.1} parent=43 // pred_fallthru
          _
        // Predicated region
        $region57: #{tpu_custom_call.1} parent=43 // pred_check
          %p297 = pneg %p110
        $region58: #{tpu_custom_call.1} parent=43 // pred_check_branch
          %299 = sbr.rel (%p297) target = $region60
        $region59: #{tpu_custom_call.1} parent=43 // pred_region
          %300 = dma.done [#allocation11], 128
        $region60: #{tpu_custom_call.1} parent=43 // pred_fallthru
          _
        // Predicated region
        $region61: #{tpu_custom_call.1} parent=43 // pred_check
          %p301 = pneg %p131
        $region62: #{tpu_custom_call.1} parent=43 // pred_check_branch
          %303 = sbr.rel (%p301) target = $region64
        $region63: #{tpu_custom_call.1} parent=43 // pred_region
          %304 = dma.done [#allocation11], 128
        $region64: #{tpu_custom_call.1} parent=43 // pred_fallthru
          _
        // Predicated region
        $region65: #{tpu_custom_call.1} parent=43 // pred_check
          %p305 = pneg %p152
        $region66: #{tpu_custom_call.1} parent=43 // pred_check_branch
          %307 = sbr.rel (%p305) target = $region68
        $region67: #{tpu_custom_call.1} parent=43 // pred_region
          %308 = dma.done [#allocation14], 16
        $region68: #{tpu_custom_call.1} parent=43 // pred_fallthru
          _
        %s309 = sand.u32 %s34, 1
        %s310 = scalar_lea.sflag [#allocation5], %s309
        %s311 = sand.u32 %s34, 1
        %s312 = smul.addr %s311, 32
        %s313 = scalar_lea.vmem [#allocation4], %s312
        %p314 = pneg %p47
        %p315 = pneg %p44
        %p316 = pneg %p68
        %p317 = pneg %p65
        %p318 = pneg %p89
        %p319 = pneg %p86
        %p320 = pneg %p110
        %p321 = pneg %p107
        %p322 = pneg %p131
        %p323 = pneg %p128
        %p324 = pneg %p152
        %p325 = pneg %p149
        %p326 = pneg %p178
        %p327 = pneg %p175
        %s328 = sand.u32 %s165, 1
        %s329 = scalar_lea.sflag [#allocation6], %s328
        %s330 = sand.u32 %s165, 1
        %s331 = smul.addr %s330, 8
        %s332 = scalar_lea.vmem [#allocation15], %s331
        %v333 = vld [vmem:[%s284] sm:$0xff]
        %v334 = vld [vmem:[%s284 + $0x10] sm:$0xff]
        %335 = vst [vmem:[#allocation2] sm:$0xff] %v333
        %336 = vst [vmem:[#allocation2 + $0x8] sm:$0xff] %v334
        %v337 = vld [vmem:[%s284] sm:$0xff]
        %v338 = vld [vmem:[%s284 + $0x8] sm:$0xff]
        %v339 = vld [vmem:[%s284 + $0x10] sm:$0xff]
        %v340 = vld [vmem:[%s284 + $0x18] sm:$0xff]
        %345 = vrot.lane.b32.xlu0 %v337, 127
        %v346 = vpop.permute.xlu0 %345
        %347 = vrot.lane.b32.xlu0 %v338, 127
        %v348 = vpop.permute.xlu0 %347
        %349 = vrot.lane.b32.xlu0 %v339, 127
        %v350 = vpop.permute.xlu0 %349
        %351 = vrot.lane.b32.xlu0 %v340, 127
        %v352 = vpop.permute.xlu0 %351
        %vm353 = vcmask 1039360
        %v354 = vsel %vm353, %v346, %v348
        %v355 = vsel %vm353, %v350, %v352
        %358 = vst [vmem:[#allocation2 + $0x10] sm:$0xff] %v354
        %359 = vst [vmem:[#allocation2 + $0x18] sm:$0xff] %v355
        %v360 = vld [vmem:[%s284] sm:$0xff]
        %v361 = vld [vmem:[%s284 + $0x8] sm:$0xff]
        %v362 = vld [vmem:[%s284 + $0x10] sm:$0xff]
        %v363 = vld [vmem:[%s284 + $0x18] sm:$0xff]
        %368 = vrot.lane.b32.xlu0 %v360, 119
        %v369 = vpop.permute.xlu0 %368
        %370 = vrot.lane.b32.xlu0 %v361, 119
        %v371 = vpop.permute.xlu0 %370
        %372 = vrot.lane.b32.xlu0 %v362, 119
        %v373 = vpop.permute.xlu0 %372
        %374 = vrot.lane.b32.xlu0 %v363, 119
        %v375 = vpop.permute.xlu0 %374
        %vm376 = vcmask 973824
        %v377 = vsel %vm376, %v369, %v371
        %v378 = vsel %vm376, %v373, %v375
        %381 = vst [vmem:[#allocation2 + $0x20] sm:$0xff] %v377
        %382 = vst [vmem:[#allocation2 + $0x28] sm:$0xff] %v378
        %v383 = vld [vmem:[%s284] sm:$0xff]
        %v384 = vld [vmem:[%s284 + $0x8] sm:$0xff]
        %v385 = vld [vmem:[%s284 + $0x10] sm:$0xff]
        %v386 = vld [vmem:[%s284 + $0x18] sm:$0xff]
        %391 = vrot.lane.b32.xlu0 %v383, 118
        %v392 = vpop.permute.xlu0 %391
        %393 = vrot.lane.b32.xlu0 %v384, 118
        %v394 = vpop.permute.xlu0 %393
        %395 = vrot.lane.b32.xlu0 %v385, 118
        %v396 = vpop.permute.xlu0 %395
        %397 = vrot.lane.b32.xlu0 %v386, 118
        %v398 = vpop.permute.xlu0 %397
        %vm399 = vcmask 965632
        %v400 = vsel %vm399, %v392, %v394
        %v401 = vsel %vm399, %v396, %v398
        %404 = vst [vmem:[#allocation2 + $0x30] sm:$0xff] %v400
        %405 = vst [vmem:[#allocation2 + $0x38] sm:$0xff] %v401
        %v406 = vld [vmem:[#allocation7] sm:$0xff]
        %v407 = vld [vmem:[#allocation2] sm:$0xff]
        %v408 = vld [vmem:[#allocation2 + $0x8] sm:$0xff]
        %v409 = vld [vmem:[#allocation2 + $0x10] sm:$0xff]
        %v410 = vld [vmem:[#allocation2 + $0x18] sm:$0xff]
        %v411 = vld [vmem:[#allocation2 + $0x20] sm:$0xff]
        %v412 = vld [vmem:[#allocation2 + $0x28] sm:$0xff]
        %v413 = vld [vmem:[#allocation2 + $0x30] sm:$0xff]
        %v414 = vld [vmem:[#allocation2 + $0x38] sm:$0xff]
        %v415 = vld [vmem:[#allocation9] sm:$0xff]
        %417 = vset.pattern.permute.xlu0 0
        %418 = vperm.xlu0 %417, %v415
        %v419 = vpop.permute.xlu0 %418
        %vm421 = vcmask 523264
        %v423 = vsel %vm421, %v406, 0
        %425 = vmatprep.subr.mxu0 0.0
        %426 = vmatpush1.msra.mxu0 %v407
        %427 = vmatprep.subr.mxu0 0.0
        %428 = vmatpush1.msra.mxu0 %v408
        %429 = vmatprep.subr.mxu0 0.0
        %430 = vmatpush1.msra.mxu0 %v409
        %431 = vmatprep.subr.mxu0 0.0
        %432 = vmatpush1.msra.mxu0 %v410
        %433 = vmatprep.subr.mxu0 0.0
        %434 = vmatpush1.msra.mxu0 %v411
        %435 = vmatprep.subr.mxu0 0.0
        %436 = vmatpush1.msra.mxu0 %v412
        %437 = vmatprep.subr.mxu0 0.0
        %438 = vmatpush1.msra.mxu0 %v413
        %439 = vmatprep.subr.mxu0 0.0
        %440 = vmatpush1.msra.mxu0 %v414
        %441 = vmatprep.subr.mxu0 0.0
        %442 = vmatpush1.msra.mxu0 0.0
        %443 = vmatprep.subr.mxu0 0.0
        %444 = vmatpush1.msra.mxu0 0.0
        %445 = vmatprep.subr.mxu0 0.0
        %446 = vmatpush1.msra.mxu0 0.0
        %447 = vmatprep.subr.mxu0 0.0
        %448 = vmatpush1.msra.mxu0 0.0
        %449 = vmatprep.subr.mxu0 0.0
        %450 = vmatpush1.msra.mxu0 0.0
        %451 = vmatprep.subr.mxu0 0.0
        %452 = vmatpush1.msra.mxu0 0.0
        %453 = vmatprep.subr.mxu0 0.0
        %454 = vmatpush1.msra.mxu0 0.0
        %455 = vmatprep.subr.mxu0 0.0
        %456 = vmatpush1.msra.mxu0 0.0
        %457 = vmatprep.subr.mxu0 0.0
        %458 = vmatpush1.msra.mxu0 0.0
        %459 = vmatprep.subr.mxu0 0.0
        %460 = vmatpush1.msra.mxu0 0.0
        %461 = vmatprep.subr.mxu0 0.0
        %462 = vmatpush1.msra.mxu0 0.0
        %463 = vmatprep.subr.mxu0 0.0
        %464 = vmatpush1.msra.mxu0 0.0
        %465 = vmatprep.subr.mxu0 0.0
        %466 = vmatpush1.msra.mxu0 0.0
        %467 = vmatprep.subr.mxu0 0.0
        %468 = vmatpush1.msra.mxu0 0.0
        %469 = vmatprep.subr.mxu0 0.0
        %470 = vmatpush1.msra.mxu0 0.0
        %471 = vmatprep.subr.mxu0 0.0
        %472 = vmatpush1.msra.mxu0 0.0
        %473 = vmatprep.subr.mxu0 0.0
        %474 = vmatpush1.msra.mxu0 0.0
        %475 = vmatprep.subr.mxu0 0.0
        %476 = vmatpush1.msra.mxu0 0.0
        %477 = vmatprep.subr.mxu0 0.0
        %478 = vmatpush1.msra.mxu0 0.0
        %479 = vmatprep.subr.mxu0 0.0
        %480 = vmatpush1.msra.mxu0 0.0
        %481 = vmatprep.subr.mxu0 0.0
        %482 = vmatpush1.msra.mxu0 0.0
        %483 = vmatprep.subr.mxu0 0.0
        %484 = vmatpush1.msra.mxu0 0.0
        %485 = vmatprep.subr.mxu0 0.0
        %486 = vmatpush1.msra.mxu0 0.0
        %487 = vmatprep.subr.mxu0 0.0
        %488 = vmatpush1.msra.mxu0 0.0
        %489 = vmatprep.mubr.f32.mxu0 0.0
        %490 = vmatmul.mubr.f32.gmra.mrb[0].mxu0 %v423
        %v491 = vpop.f32.mrb[0].mxu0
        %v492 = vadd.f32 %v419, %v491
        %v493 = vpop.f32.mrb[0].mxu0
        %494 = vdwg.mxu0
        %495 = vst [vmem:[#allocation3] sm:$0xff] %v492
        %v496 = vld [vmem:[#allocation3] sm:$0xff]
        %v497 = vld [vmem:[#allocation13] sm:$0x1]
        %v499 = vlaneseq
        %v500 = vshrl.u32 %v499, 7
        %v501 = vsub.s32 0, %v500
        %v502 = vrot.slane %v497, %v501
        %v504 = vmul.f32 %v496, %v502
        %505 = vadd.xlane.f32.xlu0 %v504
        %v506 = vpop.xlane.xlu0 %505
        %v507 = vmul.f32 %v496, %v504
        %508 = vadd.xlane.f32.xlu0 %v507
        %v509 = vpop.xlane.xlu0 %508
        %v510 = vmul.f32 %v506, 0.015625
        %v511 = vmul.f32 %v509, 0.015625
        %v512 = vmul.f32 %v510, %v510
        %v513 = vsub.f32 %v511, %v512
        %v514 = vmax.f32 %v513, 0.0
        %v515 = vadd.f32 %v514, 1e-05
        %v516 = vrsqrt.pop %v515
        %v517 = vsub.f32 %v496, %v510
        %v518 = vld [vmem:[#allocation10] sm:$0xff]
        %v519 = vmul.f32 %v516, %v518
        %521 = vset.pattern.permute.xlu0 0
        %522 = vperm.xlu0 %521, %v519
        %v523 = vpop.permute.xlu0 %522
        %v525 = vmul.f32 %v517, %v523
        %v526 = vld [vmem:[#allocation12] sm:$0xff]
        %528 = vset.pattern.permute.xlu0 0
        %529 = vperm.xlu0 %528, %v526
        %v530 = vpop.permute.xlu0 %529
        %v532 = vadd.f32 %v525, %v530
        %v533 = vmul.f32 %v532, 0.2
        %v534 = vmax.f32 %v532, %v533
        %535 = vst [vmem:[%s332] sm:$0xff] %v534
        %s536 = sand.u32 %s165, 1
        %s537 = scalar_lea.sflag [#allocation6], %s536
        %s538 = sand.u32 %s165, 1
        %s539 = smul.addr %s538, 8
        %s540 = scalar_lea.vmem [#allocation15], %s539
        // Predicated region
        $region69: #{tpu_custom_call.1} parent=43 // pred_check
          %p541 = pneg %p175
        $region70: #{tpu_custom_call.1} parent=43 // pred_check_branch
          %543 = sbr.rel (%p541) target = $region72
        $region71: #{tpu_custom_call.1} parent=43 // pred_region
          %s545 = ssub.s32 128, 128
          %546 = vsyncadd %s537, %s545
          %s547 = smul.addr %s26, 128
          %s548 = scalar_lea.hbm %s6, %s547
          %s550 = sshll.u32 %s540, 4
          %s551 = int_to_ptr.vmem [resolvable:$true] %s550
          %553 = dma.vmem_to_hbm [thread:$0]  %s551, 128, %s548, %s537
        $region72: #{tpu_custom_call.1} parent=43 // pred_fallthru
          _
      $region44: #{tpu_custom_call.1} parent=5 // pred_fallthru
        _
      %p554 = scmp.le.s32.totalorder 2, %s21
      // Predicated region
      $region73: #{tpu_custom_call.1} parent=5 // pred_check
        %p555 = pneg %p554
      $region74: #{tpu_custom_call.1} parent=5 // pred_check_branch
        %557 = sbr.rel (%p555) target = $region76
      $region75: #{tpu_custom_call.1} parent=5 // pred_region
        %s558 = ssub.s32 %s21, 2
        // Predicated region
        $region77: #{tpu_custom_call.1} parent=75 // pred_check
          %p559 = pneg %p181
        $region78: #{tpu_custom_call.1} parent=75 // pred_check_branch
          %561 = sbr.rel (%p559) target = $region80
        $region79: #{tpu_custom_call.1} parent=75 // pred_region
          %s562 = sand.u32 %s166, 1
          %s563 = scalar_lea.sflag [#allocation6], %s562
          %s564 = sand.u32 %s166, 1
          %s565 = smul.addr %s564, 8
          %s566 = scalar_lea.vmem [#allocation15], %s565
          %567 = dma.done %s563, 128
        $region80: #{tpu_custom_call.1} parent=75 // pred_fallthru
          _
      $region76: #{tpu_custom_call.1} parent=5 // pred_fallthru
        _
    $region6: #{tpu_custom_call.1} parent=1 // loop_footer
      %s25 = sadd.s32 1, %s21
    $region7: #{tpu_custom_call.1} parent=1 // loop_footer_branch
      %20 = sbr.rel target = $region3
    $region8: #{tpu_custom_call.1} parent=1 // loop_exit
      _
    %568 = vsyncpa [#allocation5], 1
    %s569 = scalar_lea.sflag [#allocation5], 1
    %570 = vsyncpa %s569, 1
    %571 = vsyncpa [#allocation8], 1
    %572 = vsyncpa [#allocation11], 1
    %573 = vsyncpa [#allocation14], 1
    %574 = vsyncpa [#allocation6], 1
    %s575 = scalar_lea.sflag [#allocation6], 1
    %576 = vsyncpa %s575, 1

</llo_original>
